<compile_context>
chip_gen: v7x
topology: tpu7x:2x2x1
jax: 0.10.0
libtpu: 0.0.40
codegen_flags: <defaults>
</compile_context>

<pallas_src>
import functools

import jax
import jax.numpy as jnp
from jax import lax
from jax.experimental import pallas as pl
from jax.experimental.pallas import tpu as pltpu


def _se_block_kernel(x_ref,      # (TB, C, HWp)  TB samples, spatial flattened+padded
                     w1_ref,     # (CR, C)       fc1 weight (PyTorch layout, no bias)
                     w2_ref,     # (C, CR)       fc2 weight (PyTorch layout, no bias)
                     o_ref,      # (TB, C, HWp)
                     *, inv_hw):
    x = x_ref[...]                                            # (TB, C, HWp)

    # --- Squeeze: global average pool over the lane-dense spatial axis ------
    # Zero padding in HWp contributes 0 to the sum; divide by the TRUE HW.
    pooled = jnp.sum(x.astype(jnp.float32), axis=-1) * inv_hw     # (TB, C) f32

    # --- Excitation: batched tiny FCs across the TB axis (no transposes) ----
    # (TB, C) . (CR, C) contracting on C  -> (TB, CR)
    h = lax.dot_general(pooled, w1_ref[...],
                        dimension_numbers=(((1,), (1,)), ((), ())),
                        preferred_element_type=jnp.float32)
    h = jnp.maximum(h, 0.0)                                        # ReLU
    # (TB, CR) . (C, CR) contracting on CR -> (TB, C)
    s = lax.dot_general(h, w2_ref[...],
                        dimension_numbers=(((1,), (1,)), ((), ())),
                        preferred_element_type=jnp.float32)
    scale = jax.nn.sigmoid(s)                                      # (TB, C) f32

    # --- Re-scale: lane broadcast of per-(sample, channel) scalar -----------
    o_ref[...] = (x.astype(jnp.float32) * scale[:, :, None]).astype(o_ref.dtype)


def _pick_tb(B, per_sample_bytes, target_block_bytes=3 * 1024 * 1024):
    """Largest per-step batch s.t. blocks stay ~3 MiB (safe on all VMEM sizes)
    while keeping >= 2 grid steps so megacore sharding stays live on v7x."""
    tb = max(1, min(B, target_block_bytes // max(per_sample_bytes, 1)))
    if B > 1:
        tb = min(tb, pl.cdiv(B, 2))
    return int(tb)


@jax.jit
def se_block_forward(x, w1, w2):
    """x: (B, C, H, W) -> (B, C, H, W), matching SEBlock.forward (no biases)."""
    B, C, H, W = x.shape
    CR = w1.shape[0]
    HW = H * W
    HWp = pl.cdiv(HW, 128) * 128            # lane-dense last dim (full vst's)

    itemsize = jnp.dtype(x.dtype).itemsize
    TB = _pick_tb(B, C * HWp * itemsize)
    n_steps = pl.cdiv(B, TB)
    Bp = n_steps * TB

    x2 = x.reshape(B, C, HW)                # contiguous reshape, no data movement
    if HWp != HW or Bp != B:                # zero-pad only when actually needed
        x2 = jnp.pad(x2, ((0, Bp - B), (0, 0), (0, HWp - HW)))

    cost = pl.CostEstimate(
        flops=2 * Bp * C * HWp              # pool add + rescale mul
              + 2 * Bp * C * CR * 2,        # the two tiny FC matmuls
        transcendentals=Bp * C,             # sigmoid
        bytes_accessed=2 * Bp * C * HWp * itemsize
                       + (w1.size + w2.size) * 4,
    )

    out = pl.pallas_call(
        functools.partial(_se_block_kernel, inv_hw=1.0 / HW),
        out_shape=jax.ShapeDtypeStruct((Bp, C, HWp), x.dtype),
        grid=(n_steps,),
        in_specs=[
            pl.BlockSpec((TB, C, HWp), lambda b: (b, 0, 0)),   # TB-sample x block
            pl.BlockSpec((CR, C), lambda b: (0, 0)),           # weights stay resident
            pl.BlockSpec((C, CR), lambda b: (0, 0)),
        ],
        out_specs=pl.BlockSpec((TB, C, HWp), lambda b: (b, 0, 0)),
        compiler_params=pltpu.CompilerParams(
            dimension_semantics=("parallel",)),                # megacore on v7x
        cost_estimate=cost,
    )(x2, w1, w2)

    if HWp != HW or Bp != B:
        out = out[:B, :, :HW]
    return out.reshape(B, C, H, W)


def _se_block_reference(x, w1, w2):
    """Pure-JAX reference mirroring the PyTorch module."""
    y = jnp.mean(x, axis=(2, 3))                  # (B, C)    AdaptiveAvgPool2d(1)
    y = jnp.maximum(y @ w1.T, 0.0)                # (B, C//r) Linear + ReLU
    y = jax.nn.sigmoid(y @ w2.T)                  # (B, C)    Linear + Sigmoid
    return x * y[:, :, None, None]


if __name__ == "__main__":
    B, C, H, W = 8, 64, 16, 16
    REDUCTION = 16
    CR = C // REDUCTION                           # 4

    key = jax.random.PRNGKey(0)
    k_x, k_w1, k_w2 = jax.random.split(key, 3)

    x = jax.random.normal(k_x, (B, C, H, W), dtype=jnp.float32)

    # nn.Linear default init: uniform(-1/sqrt(fan_in), 1/sqrt(fan_in)), no bias.
    b1 = 1.0 / (C ** 0.5)
    b2 = 1.0 / (CR ** 0.5)
    w1 = jax.random.uniform(k_w1, (CR, C), jnp.float32, -b1, b1)   # fc[0].weight
    w2 = jax.random.uniform(k_w2, (C, CR), jnp.float32, -b2, b2)   # fc[2].weight

    out = se_block_forward(x, w1, w2)
    out = jax.block_until_ready(out)

    assert out.shape == (B, C, H, W), out.shape
    ref = _se_block_reference(x, w1, w2)
    assert jnp.allclose(out, ref, rtol=1e-4, atol=1e-4), "mismatch vs reference"

    print("KERNEL_OK")
</pallas_src>

<mosaic_0001>
module attributes {stable_mosaic.version = 11 : i64} {
  func.func @_se_block_kernel(%arg0: i32, %arg1: memref<4x64x256xf32, #tpu.memory_space<vmem>>, %arg2: memref<4x64xf32, #tpu.memory_space<vmem>>, %arg3: memref<64x4xf32, #tpu.memory_space<vmem>>, %arg4: memref<4x64x256xf32, #tpu.memory_space<vmem>>) attributes {dimension_semantics = [#tpu.dimension_semantics<parallel>], iteration_bounds = array<i64: 2>, scalar_prefetch = 0 : i64, scratch_operands = 0 : i64, tpu.core_type = #tpu.core_type<tc>, window_params = [{transform_indices = @transform_0, window_bounds = array<i64: 4, 64, 256>}, {pipeline_mode = #tpu.pipeline_mode<synchronous>, transform_indices = @transform_1, window_bounds = array<i64: 4, 64>}, {pipeline_mode = #tpu.pipeline_mode<synchronous>, transform_indices = @transform_2, window_bounds = array<i64: 64, 4>}, {transform_indices = @transform_3, window_bounds = array<i64: 4, 64, 256>}]} {
    %c0 = arith.constant 0 : index
    %c0_0 = arith.constant 0 : index
    %c0_1 = arith.constant 0 : index
    %0 = vector.load %arg1[%c0, %c0_0, %c0_1] : memref<4x64x256xf32, #tpu.memory_space<vmem>>, vector<4x64x256xf32>
    %cst = arith.constant dense<0.000000e+00> : vector<4x64xf32>
    %1 = vector.multi_reduction <add>, %0, %cst [2] : vector<4x64x256xf32> to vector<4x64xf32>
    %cst_2 = arith.constant 3.906250e-03 : f32
    %2 = vector.broadcast %cst_2 : f32 to vector<4x64xf32>
    %3 = arith.mulf %1, %2 : vector<4x64xf32>
    %c0_3 = arith.constant 0 : index
    %c0_4 = arith.constant 0 : index
    %4 = vector.load %arg2[%c0_3, %c0_4] : memref<4x64xf32, #tpu.memory_space<vmem>>, vector<4x64xf32>
    %cst_5 = arith.constant dense<0.000000e+00> : vector<4x4xf32>
    %5 = tpu.matmul %3, %4, %cst_5 {dimension_numbers = #tpu.dot_dimension_numbers<[1], [1], [0], [0], [0, 0, 1, 0], [], []>} : vector<4x64xf32>, vector<4x64xf32>, vector<4x4xf32> -> vector<4x4xf32>
    %cst_6 = arith.constant 0.000000e+00 : f32
    %6 = vector.broadcast %cst_6 : f32 to vector<4x4xf32>
    %7 = arith.maximumf %5, %6 : vector<4x4xf32>
    %c0_7 = arith.constant 0 : index
    %c0_8 = arith.constant 0 : index
    %8 = vector.load %arg3[%c0_7, %c0_8] : memref<64x4xf32, #tpu.memory_space<vmem>>, vector<64x4xf32>
    %cst_9 = arith.constant dense<0.000000e+00> : vector<4x64xf32>
    %9 = tpu.matmul %7, %8, %cst_9 {dimension_numbers = #tpu.dot_dimension_numbers<[1], [1], [0], [0], [0, 0, 1, 0], [], []>} : vector<4x4xf32>, vector<64x4xf32>, vector<4x64xf32> -> vector<4x64xf32>
    %10 = arith.negf %9 : vector<4x64xf32>
    %11 = math.exp %10 : vector<4x64xf32>
    %cst_10 = arith.constant 1.000000e+00 : f32
    %12 = vector.broadcast %cst_10 : f32 to vector<4x64xf32>
    %13 = arith.addf %12, %11 : vector<4x64xf32>
    %14 = arith.divf %12, %13 : vector<4x64xf32>
    %15 = vector.shape_cast %14 : vector<4x64xf32> to vector<4x64x1xf32>
    %16 = vector.broadcast %15 : vector<4x64x1xf32> to vector<4x64x256xf32>
    %17 = arith.mulf %0, %16 : vector<4x64x256xf32>
    %c0_11 = arith.constant 0 : index
    %c0_12 = arith.constant 0 : index
    %c0_13 = arith.constant 0 : index
    %18 = vector.load %arg4[%c0_11, %c0_12, %c0_13] : memref<4x64x256xf32, #tpu.memory_space<vmem>>, vector<4x64x256xf32>
    tpu.vector_store %arg4[%c0_11, %c0_12, %c0_13], %17 {strides = array<i32>} : memref<4x64x256xf32, #tpu.memory_space<vmem>>, vector<4x64x256xf32>,
    return
  }
  func.func @transform_0(%arg0: i32) -> (i32, i32, i32) {
    %c0_i32 = arith.constant 0 : i32
    %c0_i32_0 = arith.constant 0 : i32
    %c0_i32_1 = arith.constant 0 : i32
    return %arg0, %c0_i32, %c0_i32_0 : i32, i32, i32
  }
  func.func @transform_1(%arg0: i32) -> (i32, i32) {
    %c0_i32 = arith.constant 0 : i32
    %c0_i32_0 = arith.constant 0 : i32
    %c0_i32_1 = arith.constant 0 : i32
    return %c0_i32, %c0_i32_0 : i32, i32
  }
  func.func @transform_2(%arg0: i32) -> (i32, i32) {
    %c0_i32 = arith.constant 0 : i32
    %c0_i32_0 = arith.constant 0 : i32
    %c0_i32_1 = arith.constant 0 : i32
    return %c0_i32, %c0_i32_0 : i32, i32
  }
  func.func @transform_3(%arg0: i32) -> (i32, i32, i32) {
    %c0_i32 = arith.constant 0 : i32
    %c0_i32_0 = arith.constant 0 : i32
    %c0_i32_1 = arith.constant 0 : i32
    return %arg0, %c0_i32, %c0_i32_0 : i32, i32, i32
  }
}

</mosaic_0001>

<llo_original>
// kernel: se_block_forward.1
$region0: #{se_block_forward.1}
  #allocation0 [shape = 'u32[]', space=smem, size = 0x4, offset = 0x4, fixed_abs, tag = 'smem constant byte address 0x4 - core index']
  #allocation1 [shape = 'u32[144,128]{1,0:T(1,128)}', space=vmem, size = 0x12000, scoped, tag = 'internal scratch']
  %s0 = inlined_call_operand.vmem [shape: f32[8,64,256], index: 0, kind: input, shape index: {}]
  %s1 = inlined_call_operand.vmem [shape: f32[4,64], index: 1, kind: input, shape index: {}]
  %s2 = inlined_call_operand.vmem [shape: f32[64,4], index: 2, kind: input, shape index: {}]
  %s3 = inlined_call_operand.vmem [shape: f32[8,64,256], index: 3, kind: output, shape index: {}]
  %s4 = sld [smem:[#allocation0]]
  $region45: #{se_block_forward.1} parent=0
    _
  %s6 = ssub.s32 1, %s4
  %s7 = scalar_select 0, %s6, %s4
  loop: start=0, step=1, limit=4
  $region2: #{se_block_forward.1} parent=0 // loop_pre_header
    _
  $region3: #{se_block_forward.1} parent=0 // loop_header
    %s9 = sphi 0, %s13
    %p10 = scmp.ge.s32.totalorder %s9, 4
    %s19 = sphi 0, %s21
    %s22 = sphi 0, %s19
    %s23 = sphi 0, %s22
    %s39 = sphi 0, %s23
    %s43 = sphi 0, %s43
    %s45 = sphi 0, %s43
    %s46 = sphi 0, %s45
    %s60 = sphi 0, %s46
    %s64 = sphi 0, %s64
    %s66 = sphi 0, %s64
    %s67 = sphi 0, %s66
    %s81 = sphi 0, %s67
    %s87 = sphi 0, %s89
    %s90 = sphi 0, %s87
    %s91 = sphi 0, %s90
    %s107 = sphi 0, %s91
  $region4: #{se_block_forward.1} parent=0 // loop_header_branch
    %12 = sbr.rel (%p10) target = $region8
  $region5: #{se_block_forward.1} parent=0 // loop_body
    %s14 = ssub.s32 %s9, 1
    %s15 = ssub.s32 %s9, 2
    %s16 = sadd.s32 %s9, 1
    %s17 = ssub.s32 %s9, %s16
    %p18 = scmp.eq.s32.totalorder %s17, 0
    %s20 = sadd.s32 %s19, 1
    %s21 = scalar_select %p18, %s19, %s20
    %p24 = pneg %p18
    %p25 = scmp.eq.s32.totalorder %s9, 1
    %p26 = por %p24, %p25
    %p27 = scmp.ne.s32.totalorder %s19, %s22
    %p28 = scmp.eq.s32.totalorder %s9, 0
    %p29 = por %p27, %p28
    %p30 = scmp.ne.s32.totalorder %s19, %s22
    %p31 = scmp.eq.s32.totalorder %s14, 1
    %p32 = por %p30, %p31
    %p33 = scmp.ne.s32.totalorder %s22, %s23
    %p34 = scmp.eq.s32.totalorder %s14, 0
    %p35 = por %p33, %p34
    %p36 = scmp.ne.s32.totalorder %s22, %s23
    %p37 = scmp.eq.s32.totalorder %s15, 1
    %p38 = por %p36, %p37
    %p40 = scmp.ne.s32.totalorder %s23, %s39
    %p41 = scmp.eq.s32.totalorder %s15, 0
    %p42 = por %p40, %p41
    %s44 = sadd.s32 %s43, 1
    %p47 = scmp.eq.s32.totalorder %s9, 1
    %p48 = scmp.ne.s32.totalorder %s43, %s45
    %p49 = scmp.eq.s32.totalorder %s9, 0
    %p50 = por %p48, %p49
    %p51 = scmp.ne.s32.totalorder %s43, %s45
    %p52 = scmp.eq.s32.totalorder %s14, 1
    %p53 = por %p51, %p52
    %p54 = scmp.ne.s32.totalorder %s45, %s46
    %p55 = scmp.eq.s32.totalorder %s14, 0
    %p56 = por %p54, %p55
    %p57 = scmp.ne.s32.totalorder %s45, %s46
    %p58 = scmp.eq.s32.totalorder %s15, 1
    %p59 = por %p57, %p58
    %p61 = scmp.ne.s32.totalorder %s46, %s60
    %p62 = scmp.eq.s32.totalorder %s15, 0
    %p63 = por %p61, %p62
    %s65 = sadd.s32 %s64, 1
    %p68 = scmp.eq.s32.totalorder %s9, 1
    %p69 = scmp.ne.s32.totalorder %s64, %s66
    %p70 = scmp.eq.s32.totalorder %s9, 0
    %p71 = por %p69, %p70
    %p72 = scmp.ne.s32.totalorder %s64, %s66
    %p73 = scmp.eq.s32.totalorder %s14, 1
    %p74 = por %p72, %p73
    %p75 = scmp.ne.s32.totalorder %s66, %s67
    %p76 = scmp.eq.s32.totalorder %s14, 0
    %p77 = por %p75, %p76
    %p78 = scmp.ne.s32.totalorder %s66, %s67
    %p79 = scmp.eq.s32.totalorder %s15, 1
    %p80 = por %p78, %p79
    %p82 = scmp.ne.s32.totalorder %s67, %s81
    %p83 = scmp.eq.s32.totalorder %s15, 0
    %p84 = por %p82, %p83
    %s85 = ssub.s32 %s9, %s16
    %p86 = scmp.eq.s32.totalorder %s85, 0
    %s88 = sadd.s32 %s87, 1
    %s89 = scalar_select %p86, %s87, %s88
    %p92 = pneg %p86
    %p93 = scmp.eq.s32.totalorder %s9, 1
    %p94 = por %p92, %p93
    %p95 = scmp.ne.s32.totalorder %s87, %s90
    %p96 = scmp.eq.s32.totalorder %s9, 0
    %p97 = por %p95, %p96
    %p98 = scmp.ne.s32.totalorder %s87, %s90
    %p99 = scmp.eq.s32.totalorder %s14, 1
    %p100 = por %p98, %p99
    %p101 = scmp.ne.s32.totalorder %s90, %s91
    %p102 = scmp.eq.s32.totalorder %s14, 0
    %p103 = por %p101, %p102
    %p104 = scmp.ne.s32.totalorder %s90, %s91
    %p105 = scmp.eq.s32.totalorder %s15, 1
    %p106 = por %p104, %p105
    %p108 = scmp.ne.s32.totalorder %s91, %s107
    %p109 = scmp.eq.s32.totalorder %s15, 0
    %p110 = por %p108, %p109
    %p111 = scmp.le.s32.totalorder 1, %s9
    %p112 = scmp.lt.s32.totalorder %s9, 3
    %p113 = pnand %p111, %p112
    %p114 = pneg %p113
    // Predicated region
    $region9: #{se_block_forward.1} parent=5 // pred_check
      _
    $region10: #{se_block_forward.1} parent=5 // pred_check_branch
      %116 = sbr.rel (%p113) target = $region12
    $region11: #{se_block_forward.1} parent=5 // pred_region
      %s117 = ssub.s32 %s9, 1
      // Predicated region
      $region13: #{se_block_forward.1} parent=11 // pred_check
        %p118 = pneg %p56
      $region14: #{se_block_forward.1} parent=11 // pred_check_branch
        %120 = sbr.rel (%p118) target = $region16
      $region15: #{se_block_forward.1} parent=11 // pred_region
        _
      $region16: #{se_block_forward.1} parent=11 // pred_fallthru
        _
      // Predicated region
      $region17: #{se_block_forward.1} parent=11 // pred_check
        %p121 = pneg %p77
      $region18: #{se_block_forward.1} parent=11 // pred_check_branch
        %123 = sbr.rel (%p121) target = $region20
      $region19: #{se_block_forward.1} parent=11 // pred_region
        _
      $region20: #{se_block_forward.1} parent=11 // pred_fallthru
        _
    $region12: #{se_block_forward.1} parent=5 // pred_fallthru
      _
    %p124 = scmp.lt.s32.totalorder %s9, 2
    // Predicated region
    $region21: #{se_block_forward.1} parent=5 // pred_check
      %p125 = pneg %p124
    $region22: #{se_block_forward.1} parent=5 // pred_check_branch
      %127 = sbr.rel (%p125) target = $region24
    $region23: #{se_block_forward.1} parent=5 // pred_region
      // Predicated region
      $region25: #{se_block_forward.1} parent=23 // pred_check
        %p128 = pneg %p29
      $region26: #{se_block_forward.1} parent=23 // pred_check_branch
        %130 = sbr.rel (%p128) target = $region28
      $region27: #{se_block_forward.1} parent=23 // pred_region
        %s131 = smul.u32 4, %s9
        %p132 = scmp.lt.s32.totalorder %s131, 7
        %s133 = scalar_select %p132, %s131, 7
        %s134 = smul.addr %s133, 16
        %s135 = smul.addr %s134, 8
        %s136 = scalar_lea.vmem %s0, %s135
        %s137 = smul.u32 4, %s9
      $region28: #{se_block_forward.1} parent=23 // pred_fallthru
        _
    $region24: #{se_block_forward.1} parent=5 // pred_fallthru
      _
    %p138 = scmp.le.s32.totalorder 1, %s9
    %p139 = scmp.lt.s32.totalorder %s9, 3
    %p140 = pnand %p138, %p139
    %p141 = pneg %p140
    // Predicated region
    $region29: #{se_block_forward.1} parent=5 // pred_check
      _
    $region30: #{se_block_forward.1} parent=5 // pred_check_branch
      %143 = sbr.rel (%p140) target = $region32
    $region31: #{se_block_forward.1} parent=5 // pred_region
      %s144 = ssub.s32 %s9, 1
      %s145 = smul.u32 4, %s14
      %p146 = scmp.lt.s32.totalorder %s145, 7
      %s147 = scalar_select %p146, %s145, 7
      %s148 = smul.addr %s147, 16
      %s149 = smul.addr %s148, 8
      %s150 = scalar_lea.vmem %s0, %s149
      %p151 = pneg %p35
      %p152 = pneg %p32
      %p153 = pneg %p56
      %p154 = pneg %p53
      %p155 = pneg %p77
      %p156 = pneg %p74
      %p157 = pneg %p103
      %p158 = pneg %p100
      %s159 = smul.u32 4, %s14
      %p160 = scmp.lt.s32.totalorder %s159, 7
      %s161 = scalar_select %p160, %s159, 7
      %s162 = smul.addr %s161, 16
      %s163 = smul.addr %s162, 8
      %s164 = scalar_lea.vmem %s3, %s163
      %s165 = smul.u32 4, %s14
      %p166 = scmp.lt.s32.totalorder %s165, 7
      %s167 = scalar_select %p166, %s165, 7
      %s168 = smul.addr %s167, 16
      %s169 = smul.addr %s168, 8
      %s170 = scalar_lea.vmem %s0, %s169
      %s171 = smul.u32 4, %s14
      %s172 = smul.u32 4, %s14
      %p173 = scmp.lt.s32.totalorder %s172, 7
      %s174 = scalar_select %p173, %s172, 7
      %s175 = smul.addr %s174, 16
      %s176 = smul.addr %s175, 8
      %s177 = scalar_lea.vmem %s3, %s176
      %s178 = smul.u32 4, %s14
      %v179 = vld [vmem:[%s170] sm:$0xff]
      %v180 = vld [vmem:[%s170 + $0x8] sm:$0xff]
      %v181 = vld [vmem:[%s170 + $0x10] sm:$0xff]
      %v182 = vld [vmem:[%s170 + $0x18] sm:$0xff]
      %v183 = vld [vmem:[%s170 + $0x20] sm:$0xff]
      %v184 = vld [vmem:[%s170 + $0x28] sm:$0xff]
      %v185 = vld [vmem:[%s170 + $0x30] sm:$0xff]
      %v186 = vld [vmem:[%s170 + $0x38] sm:$0xff]
      %v187 = vld [vmem:[%s170 + $0x40] sm:$0xff]
      %v188 = vld [vmem:[%s170 + $0x48] sm:$0xff]
      %v189 = vld [vmem:[%s170 + $0x50] sm:$0xff]
      %v190 = vld [vmem:[%s170 + $0x58] sm:$0xff]
      %v191 = vld [vmem:[%s170 + $0x60] sm:$0xff]
      %v192 = vld [vmem:[%s170 + $0x68] sm:$0xff]
      %v193 = vld [vmem:[%s170 + $0x70] sm:$0xff]
      %v194 = vld [vmem:[%s170 + $0x78] sm:$0xff]
      %v195 = vld [vmem:[%s170 + $0x80] sm:$0xff]
      %v196 = vld [vmem:[%s170 + $0x88] sm:$0xff]
      %v197 = vld [vmem:[%s170 + $0x90] sm:$0xff]
      %v198 = vld [vmem:[%s170 + $0x98] sm:$0xff]
      %v199 = vld [vmem:[%s170 + $0xa0] sm:$0xff]
      %v200 = vld [vmem:[%s170 + $0xa8] sm:$0xff]
      %v201 = vld [vmem:[%s170 + $0xb0] sm:$0xff]
      %v202 = vld [vmem:[%s170 + $0xb8] sm:$0xff]
      %v203 = vld [vmem:[%s170 + $0xc0] sm:$0xff]
      %v204 = vld [vmem:[%s170 + $0xc8] sm:$0xff]
      %v205 = vld [vmem:[%s170 + $0xd0] sm:$0xff]
      %v206 = vld [vmem:[%s170 + $0xd8] sm:$0xff]
      %v207 = vld [vmem:[%s170 + $0xe0] sm:$0xff]
      %v208 = vld [vmem:[%s170 + $0xe8] sm:$0xff]
      %v209 = vld [vmem:[%s170 + $0xf0] sm:$0xff]
      %v210 = vld [vmem:[%s170 + $0xf8] sm:$0xff]
      %v211 = vld [vmem:[%s170 + $0x100] sm:$0xff]
      %v212 = vld [vmem:[%s170 + $0x108] sm:$0xff]
      %v213 = vld [vmem:[%s170 + $0x110] sm:$0xff]
      %v214 = vld [vmem:[%s170 + $0x118] sm:$0xff]
      %v215 = vld [vmem:[%s170 + $0x120] sm:$0xff]
      %v216 = vld [vmem:[%s170 + $0x128] sm:$0xff]
      %v217 = vld [vmem:[%s170 + $0x130] sm:$0xff]
      %v218 = vld [vmem:[%s170 + $0x138] sm:$0xff]
      %v219 = vld [vmem:[%s170 + $0x140] sm:$0xff]
      %v220 = vld [vmem:[%s170 + $0x148] sm:$0xff]
      %v221 = vld [vmem:[%s170 + $0x150] sm:$0xff]
      %v222 = vld [vmem:[%s170 + $0x158] sm:$0xff]
      %v223 = vld [vmem:[%s170 + $0x160] sm:$0xff]
      %v224 = vld [vmem:[%s170 + $0x168] sm:$0xff]
      %v225 = vld [vmem:[%s170 + $0x170] sm:$0xff]
      %v226 = vld [vmem:[%s170 + $0x178] sm:$0xff]
      %v227 = vld [vmem:[%s170 + $0x180] sm:$0xff]
      %v228 = vld [vmem:[%s170 + $0x188] sm:$0xff]
      %v229 = vld [vmem:[%s170 + $0x190] sm:$0xff]
      %v230 = vld [vmem:[%s170 + $0x198] sm:$0xff]
      %v231 = vld [vmem:[%s170 + $0x1a0] sm:$0xff]
      %v232 = vld [vmem:[%s170 + $0x1a8] sm:$0xff]
      %v233 = vld [vmem:[%s170 + $0x1b0] sm:$0xff]
      %v234 = vld [vmem:[%s170 + $0x1b8] sm:$0xff]
      %v235 = vld [vmem:[%s170 + $0x1c0] sm:$0xff]
      %v236 = vld [vmem:[%s170 + $0x1c8] sm:$0xff]
      %v237 = vld [vmem:[%s170 + $0x1d0] sm:$0xff]
      %v238 = vld [vmem:[%s170 + $0x1d8] sm:$0xff]
      %v239 = vld [vmem:[%s170 + $0x1e0] sm:$0xff]
      %v240 = vld [vmem:[%s170 + $0x1e8] sm:$0xff]
      %v241 = vld [vmem:[%s170 + $0x1f0] sm:$0xff]
      %v242 = vld [vmem:[%s170 + $0x1f8] sm:$0xff]
      %v243 = vadd.f32 %v179, %v180
      %244 = vadd.xlane.f32.xlu0 %v243
      %v245 = vpop.xlane.xlu0 %244
      %v246 = vadd.f32 %v181, %v182
      %247 = vadd.xlane.f32.xlu0 %v246
      %v248 = vpop.xlane.xlu0 %247
      %v249 = vadd.f32 %v183, %v184
      %250 = vadd.xlane.f32.xlu0 %v249
      %v251 = vpop.xlane.xlu0 %250
      %v252 = vadd.f32 %v185, %v186
      %253 = vadd.xlane.f32.xlu0 %v252
      %v254 = vpop.xlane.xlu0 %253
      %v255 = vadd.f32 %v187, %v188
      %256 = vadd.xlane.f32.xlu0 %v255
      %v257 = vpop.xlane.xlu0 %256
      %v258 = vadd.f32 %v189, %v190
      %259 = vadd.xlane.f32.xlu0 %v258
      %v260 = vpop.xlane.xlu0 %259
      %v261 = vadd.f32 %v191, %v192
      %262 = vadd.xlane.f32.xlu0 %v261
      %v263 = vpop.xlane.xlu0 %262
      %v264 = vadd.f32 %v193, %v194
      %265 = vadd.xlane.f32.xlu0 %v264
      %v266 = vpop.xlane.xlu0 %265
      %v267 = vadd.f32 %v195, %v196
      %268 = vadd.xlane.f32.xlu0 %v267
      %v269 = vpop.xlane.xlu0 %268
      %v270 = vadd.f32 %v197, %v198
      %271 = vadd.xlane.f32.xlu0 %v270
      %v272 = vpop.xlane.xlu0 %271
      %v273 = vadd.f32 %v199, %v200
      %274 = vadd.xlane.f32.xlu0 %v273
      %v275 = vpop.xlane.xlu0 %274
      %v276 = vadd.f32 %v201, %v202
      %277 = vadd.xlane.f32.xlu0 %v276
      %v278 = vpop.xlane.xlu0 %277
      %v279 = vadd.f32 %v203, %v204
      %280 = vadd.xlane.f32.xlu0 %v279
      %v281 = vpop.xlane.xlu0 %280
      %v282 = vadd.f32 %v205, %v206
      %283 = vadd.xlane.f32.xlu0 %v282
      %v284 = vpop.xlane.xlu0 %283
      %v285 = vadd.f32 %v207, %v208
      %286 = vadd.xlane.f32.xlu0 %v285
      %v287 = vpop.xlane.xlu0 %286
      %v288 = vadd.f32 %v209, %v210
      %289 = vadd.xlane.f32.xlu0 %v288
      %v290 = vpop.xlane.xlu0 %289
      %v291 = vadd.f32 %v211, %v212
      %292 = vadd.xlane.f32.xlu0 %v291
      %v293 = vpop.xlane.xlu0 %292
      %v294 = vadd.f32 %v213, %v214
      %295 = vadd.xlane.f32.xlu0 %v294
      %v296 = vpop.xlane.xlu0 %295
      %v297 = vadd.f32 %v215, %v216
      %298 = vadd.xlane.f32.xlu0 %v297
      %v299 = vpop.xlane.xlu0 %298
      %v300 = vadd.f32 %v217, %v218
      %301 = vadd.xlane.f32.xlu0 %v300
      %v302 = vpop.xlane.xlu0 %301
      %v303 = vadd.f32 %v219, %v220
      %304 = vadd.xlane.f32.xlu0 %v303
      %v305 = vpop.xlane.xlu0 %304
      %v306 = vadd.f32 %v221, %v222
      %307 = vadd.xlane.f32.xlu0 %v306
      %v308 = vpop.xlane.xlu0 %307
      %v309 = vadd.f32 %v223, %v224
      %310 = vadd.xlane.f32.xlu0 %v309
      %v311 = vpop.xlane.xlu0 %310
      %v312 = vadd.f32 %v225, %v226
      %313 = vadd.xlane.f32.xlu0 %v312
      %v314 = vpop.xlane.xlu0 %313
      %v315 = vadd.f32 %v227, %v228
      %316 = vadd.xlane.f32.xlu0 %v315
      %v317 = vpop.xlane.xlu0 %316
      %v318 = vadd.f32 %v229, %v230
      %319 = vadd.xlane.f32.xlu0 %v318
      %v320 = vpop.xlane.xlu0 %319
      %v321 = vadd.f32 %v231, %v232
      %322 = vadd.xlane.f32.xlu0 %v321
      %v323 = vpop.xlane.xlu0 %322
      %v324 = vadd.f32 %v233, %v234
      %325 = vadd.xlane.f32.xlu0 %v324
      %v326 = vpop.xlane.xlu0 %325
      %v327 = vadd.f32 %v235, %v236
      %328 = vadd.xlane.f32.xlu0 %v327
      %v329 = vpop.xlane.xlu0 %328
      %v330 = vadd.f32 %v237, %v238
      %331 = vadd.xlane.f32.xlu0 %v330
      %v332 = vpop.xlane.xlu0 %331
      %v333 = vadd.f32 %v239, %v240
      %334 = vadd.xlane.f32.xlu0 %v333
      %v335 = vpop.xlane.xlu0 %334
      %v336 = vadd.f32 %v241, %v242
      %337 = vadd.xlane.f32.xlu0 %v336
      %v338 = vpop.xlane.xlu0 %337
      %v339 = vmul.f32 %v245, 0.00390625
      %v340 = vmul.f32 %v248, 0.00390625
      %v341 = vmul.f32 %v251, 0.00390625
      %v342 = vmul.f32 %v254, 0.00390625
      %v343 = vmul.f32 %v257, 0.00390625
      %v344 = vmul.f32 %v260, 0.00390625
      %v345 = vmul.f32 %v263, 0.00390625
      %v346 = vmul.f32 %v266, 0.00390625
      %v347 = vmul.f32 %v269, 0.00390625
      %v348 = vmul.f32 %v272, 0.00390625
      %v349 = vmul.f32 %v275, 0.00390625
      %v350 = vmul.f32 %v278, 0.00390625
      %v351 = vmul.f32 %v281, 0.00390625
      %v352 = vmul.f32 %v284, 0.00390625
      %v353 = vmul.f32 %v287, 0.00390625
      %v354 = vmul.f32 %v290, 0.00390625
      %v355 = vmul.f32 %v293, 0.00390625
      %v356 = vmul.f32 %v296, 0.00390625
      %v357 = vmul.f32 %v299, 0.00390625
      %v358 = vmul.f32 %v302, 0.00390625
      %v359 = vmul.f32 %v305, 0.00390625
      %v360 = vmul.f32 %v308, 0.00390625
      %v361 = vmul.f32 %v311, 0.00390625
      %v362 = vmul.f32 %v314, 0.00390625
      %v363 = vmul.f32 %v317, 0.00390625
      %v364 = vmul.f32 %v320, 0.00390625
      %v365 = vmul.f32 %v323, 0.00390625
      %v366 = vmul.f32 %v326, 0.00390625
      %v367 = vmul.f32 %v329, 0.00390625
      %v368 = vmul.f32 %v332, 0.00390625
      %v369 = vmul.f32 %v335, 0.00390625
      %v370 = vmul.f32 %v338, 0.00390625
      %v371 = vld [vmem:[%s1] sm:$0xf]
      %v404 = vlaneseq
      %v405 = vand.u32 %v404, 127
      %v406 = vlaneseq
      %v407 = vshrl.u32 %v406, 7
      %v408 = vsub.s32 %v405, %v407
      %v409 = vrot.slane %v339, %v408
      %v410 = vadd.s32 %v405, 4294967288
      %v411 = vlaneseq
      %v412 = vshrl.u32 %v411, 7
      %v413 = vsub.s32 %v410, %v412
      %v414 = vrot.slane %v340, %v413
      %vm415 = vcmask 130112
      %v416 = vsel %vm415, %v414, %v409
      %v417 = vadd.s32 %v405, 4294967280
      %v418 = vlaneseq
      %v419 = vshrl.u32 %v418, 7
      %v420 = vsub.s32 %v417, %v419
      %v421 = vrot.slane %v341, %v420
      %vm422 = vcmask 195712
      %v423 = vsel %vm422, %v421, %v416
      %v424 = vadd.s32 %v405, 4294967272
      %v425 = vlaneseq
      %v426 = vshrl.u32 %v425, 7
      %v427 = vsub.s32 %v424, %v426
      %v428 = vrot.slane %v342, %v427
      %vm429 = vcmask 261312
      %v430 = vsel %vm429, %v428, %v423
      %v431 = vadd.s32 %v405, 4294967264
      %v432 = vlaneseq
      %v433 = vshrl.u32 %v432, 7
      %v434 = vsub.s32 %v431, %v433
      %v435 = vrot.slane %v343, %v434
      %vm436 = vcmask 326912
      %v437 = vsel %vm436, %v435, %v430
      %v438 = vadd.s32 %v405, 4294967256
      %v439 = vlaneseq
      %v440 = vshrl.u32 %v439, 7
      %v441 = vsub.s32 %v438, %v440
      %v442 = vrot.slane %v344, %v441
      %vm443 = vcmask 392512
      %v444 = vsel %vm443, %v442, %v437
      %v445 = vadd.s32 %v405, 4294967248
      %v446 = vlaneseq
      %v447 = vshrl.u32 %v446, 7
      %v448 = vsub.s32 %v445, %v447
      %v449 = vrot.slane %v345, %v448
      %vm450 = vcmask 458112
      %v451 = vsel %vm450, %v449, %v444
      %v452 = vadd.s32 %v405, 4294967240
      %v453 = vlaneseq
      %v454 = vshrl.u32 %v453, 7
      %v455 = vsub.s32 %v452, %v454
      %v456 = vrot.slane %v346, %v455
      %vm457 = vcmask 523712
      %v458 = vsel %vm457, %v456, %v451
      %v459 = vlaneseq
      %v460 = vshrl.u32 %v459, 7
      %v461 = vsub.s32 %v405, %v460
      %v462 = vrot.slane %v347, %v461
      %v463 = vlaneseq
      %v464 = vshrl.u32 %v463, 7
      %v465 = vsub.s32 %v410, %v464
      %v466 = vrot.slane %v348, %v465
      %v467 = vsel %vm415, %v466, %v462
      %v468 = vlaneseq
      %v469 = vshrl.u32 %v468, 7
      %v470 = vsub.s32 %v417, %v469
      %v471 = vrot.slane %v349, %v470
      %v472 = vsel %vm422, %v471, %v467
      %v473 = vlaneseq
      %v474 = vshrl.u32 %v473, 7
      %v475 = vsub.s32 %v424, %v474
      %v476 = vrot.slane %v350, %v475
      %v477 = vsel %vm429, %v476, %v472
      %v478 = vlaneseq
      %v479 = vshrl.u32 %v478, 7
      %v480 = vsub.s32 %v431, %v479
      %v481 = vrot.slane %v351, %v480
      %v482 = vsel %vm436, %v481, %v477
      %v483 = vlaneseq
      %v484 = vshrl.u32 %v483, 7
      %v485 = vsub.s32 %v438, %v484
      %v486 = vrot.slane %v352, %v485
      %v487 = vsel %vm443, %v486, %v482
      %v488 = vlaneseq
      %v489 = vshrl.u32 %v488, 7
      %v490 = vsub.s32 %v445, %v489
      %v491 = vrot.slane %v353, %v490
      %v492 = vsel %vm450, %v491, %v487
      %v493 = vlaneseq
      %v494 = vshrl.u32 %v493, 7
      %v495 = vsub.s32 %v452, %v494
      %v496 = vrot.slane %v354, %v495
      %v497 = vsel %vm457, %v496, %v492
      %v498 = vlaneseq
      %v499 = vshrl.u32 %v498, 7
      %v500 = vsub.s32 %v405, %v499
      %v501 = vrot.slane %v355, %v500
      %v502 = vlaneseq
      %v503 = vshrl.u32 %v502, 7
      %v504 = vsub.s32 %v410, %v503
      %v505 = vrot.slane %v356, %v504
      %v506 = vsel %vm415, %v505, %v501
      %v507 = vlaneseq
      %v508 = vshrl.u32 %v507, 7
      %v509 = vsub.s32 %v417, %v508
      %v510 = vrot.slane %v357, %v509
      %v511 = vsel %vm422, %v510, %v506
      %v512 = vlaneseq
      %v513 = vshrl.u32 %v512, 7
      %v514 = vsub.s32 %v424, %v513
      %v515 = vrot.slane %v358, %v514
      %v516 = vsel %vm429, %v515, %v511
      %v517 = vlaneseq
      %v518 = vshrl.u32 %v517, 7
      %v519 = vsub.s32 %v431, %v518
      %v520 = vrot.slane %v359, %v519
      %v521 = vsel %vm436, %v520, %v516
      %v522 = vlaneseq
      %v523 = vshrl.u32 %v522, 7
      %v524 = vsub.s32 %v438, %v523
      %v525 = vrot.slane %v360, %v524
      %v526 = vsel %vm443, %v525, %v521
      %v527 = vlaneseq
      %v528 = vshrl.u32 %v527, 7
      %v529 = vsub.s32 %v445, %v528
      %v530 = vrot.slane %v361, %v529
      %v531 = vsel %vm450, %v530, %v526
      %v532 = vlaneseq
      %v533 = vshrl.u32 %v532, 7
      %v534 = vsub.s32 %v452, %v533
      %v535 = vrot.slane %v362, %v534
      %v536 = vsel %vm457, %v535, %v531
      %v537 = vlaneseq
      %v538 = vshrl.u32 %v537, 7
      %v539 = vsub.s32 %v405, %v538
      %v540 = vrot.slane %v363, %v539
      %v541 = vlaneseq
      %v542 = vshrl.u32 %v541, 7
      %v543 = vsub.s32 %v410, %v542
      %v544 = vrot.slane %v364, %v543
      %v545 = vsel %vm415, %v544, %v540
      %v546 = vlaneseq
      %v547 = vshrl.u32 %v546, 7
      %v548 = vsub.s32 %v417, %v547
      %v549 = vrot.slane %v365, %v548
      %v550 = vsel %vm422, %v549, %v545
      %v551 = vlaneseq
      %v552 = vshrl.u32 %v551, 7
      %v553 = vsub.s32 %v424, %v552
      %v554 = vrot.slane %v366, %v553
      %v555 = vsel %vm429, %v554, %v550
      %v556 = vlaneseq
      %v557 = vshrl.u32 %v556, 7
      %v558 = vsub.s32 %v431, %v557
      %v559 = vrot.slane %v367, %v558
      %v560 = vsel %vm436, %v559, %v555
      %v561 = vlaneseq
      %v562 = vshrl.u32 %v561, 7
      %v563 = vsub.s32 %v438, %v562
      %v564 = vrot.slane %v368, %v563
      %v565 = vsel %vm443, %v564, %v560
      %v566 = vlaneseq
      %v567 = vshrl.u32 %v566, 7
      %v568 = vsub.s32 %v445, %v567
      %v569 = vrot.slane %v369, %v568
      %v570 = vsel %vm450, %v569, %v565
      %v571 = vlaneseq
      %v572 = vshrl.u32 %v571, 7
      %v573 = vsub.s32 %v452, %v572
      %v574 = vrot.slane %v370, %v573
      %v575 = vsel %vm457, %v574, %v570
      %vm576 = vcmask 1041409
      %v577 = vsel %vm576, %v497, %v458
      %vm578 = vcmask 1042434
      %v579 = vsel %vm578, %v536, %v577
      %vm580 = vcmask 1043459
      %v581 = vsel %vm580, %v575, %v579
      %vm582 = vcmask 523264
      %v583 = vsel %vm582, %v581, 0
      %v586 = vsel %vm582, %v371, 0
      %588 = vmatprep.subr.mxu0 0.0
      %589 = vmatpush1.xpose.msra.mxu0 %v586
      %590 = vmatprep.subr.mxu0 0.0
      %591 = vmatpush1.xpose.msra.mxu0 0.0
      %592 = vmatprep.subr.mxu0 0.0
      %593 = vmatpush1.xpose.msra.mxu0 0.0
      %594 = vmatprep.subr.mxu0 0.0
      %595 = vmatpush1.xpose.msra.mxu0 0.0
      %596 = vmatprep.subr.mxu0 0.0
      %597 = vmatpush1.xpose.msra.mxu0 0.0
      %598 = vmatprep.subr.mxu0 0.0
      %599 = vmatpush1.xpose.msra.mxu0 0.0
      %600 = vmatprep.subr.mxu0 0.0
      %601 = vmatpush1.xpose.msra.mxu0 0.0
      %602 = vmatprep.subr.mxu0 0.0
      %603 = vmatpush1.xpose.msra.mxu0 0.0
      %604 = vmatprep.subr.mxu0 0.0
      %605 = vmatpush1.xpose.msra.mxu0 0.0
      %606 = vmatprep.subr.mxu0 0.0
      %607 = vmatpush1.xpose.msra.mxu0 0.0
      %608 = vmatprep.subr.mxu0 0.0
      %609 = vmatpush1.xpose.msra.mxu0 0.0
      %610 = vmatprep.subr.mxu0 0.0
      %611 = vmatpush1.xpose.msra.mxu0 0.0
      %612 = vmatprep.subr.mxu0 0.0
      %613 = vmatpush1.xpose.msra.mxu0 0.0
      %614 = vmatprep.subr.mxu0 0.0
      %615 = vmatpush1.xpose.msra.mxu0 0.0
      %616 = vmatprep.subr.mxu0 0.0
      %617 = vmatpush1.xpose.msra.mxu0 0.0
      %618 = vmatprep.subr.mxu0 0.0
      %619 = vmatpush1.xpose.msra.mxu0 0.0
      %620 = vmatprep.subr.mxu0 0.0
      %621 = vmatpush1.xpose.msra.mxu0 0.0
      %622 = vmatprep.subr.mxu0 0.0
      %623 = vmatpush1.xpose.msra.mxu0 0.0
      %624 = vmatprep.subr.mxu0 0.0
      %625 = vmatpush1.xpose.msra.mxu0 0.0
      %626 = vmatprep.subr.mxu0 0.0
      %627 = vmatpush1.xpose.msra.mxu0 0.0
      %628 = vmatprep.subr.mxu0 0.0
      %629 = vmatpush1.xpose.msra.mxu0 0.0
      %630 = vmatprep.subr.mxu0 0.0
      %631 = vmatpush1.xpose.msra.mxu0 0.0
      %632 = vmatprep.subr.mxu0 0.0
      %633 = vmatpush1.xpose.msra.mxu0 0.0
      %634 = vmatprep.subr.mxu0 0.0
      %635 = vmatpush1.xpose.msra.mxu0 0.0
      %636 = vmatprep.subr.mxu0 0.0
      %637 = vmatpush1.xpose.msra.mxu0 0.0
      %638 = vmatprep.subr.mxu0 0.0
      %639 = vmatpush1.xpose.msra.mxu0 0.0
      %640 = vmatprep.subr.mxu0 0.0
      %641 = vmatpush1.xpose.msra.mxu0 0.0
      %642 = vmatprep.subr.mxu0 0.0
      %643 = vmatpush1.xpose.msra.mxu0 0.0
      %644 = vmatprep.subr.mxu0 0.0
      %645 = vmatpush1.xpose.msra.mxu0 0.0
      %646 = vmatprep.subr.mxu0 0.0
      %647 = vmatpush1.xpose.msra.mxu0 0.0
      %648 = vmatprep.subr.mxu0 0.0
      %649 = vmatpush1.xpose.msra.mxu0 0.0
      %650 = vmatprep.subr.mxu0 0.0
      %651 = vmatpush1.xpose.msra.mxu0 0.0
      %652 = vmatprep.mubr.f32.mxu0 0.0
      %653 = vmatmul.mubr.f32.gmra.mrb[0].mxu0 %v583
      %v654 = vpop.f32.mrb[0].mxu0
      %v655 = vadd.f32 0.0, %v654
      %v656 = vpop.f32.mrb[0].mxu0
      %657 = vdwg.mxu0
      %v658 = vmax.f32 %v655, 0.0
      %v659 = vld [vmem:[%s2] sm:$0xff]
      %v660 = vld [vmem:[%s2 + $0x8] sm:$0xff]
      %v661 = vld [vmem:[%s2 + $0x10] sm:$0xff]
      %v662 = vld [vmem:[%s2 + $0x18] sm:$0xff]
      %v663 = vld [vmem:[%s2 + $0x20] sm:$0xff]
      %v664 = vld [vmem:[%s2 + $0x28] sm:$0xff]
      %v665 = vld [vmem:[%s2 + $0x30] sm:$0xff]
      %v666 = vld [vmem:[%s2 + $0x38] sm:$0xff]
      %vm667 = vcmask 31744
      %v669 = vsel %vm667, %v658, 0
      %v672 = vsel %vm667, %v659, 0
      %v675 = vsel %vm667, %v660, 0
      %v678 = vsel %vm667, %v661, 0
      %v681 = vsel %vm667, %v662, 0
      %v684 = vsel %vm667, %v663, 0
      %v687 = vsel %vm667, %v664, 0
      %v690 = vsel %vm667, %v665, 0
      %v693 = vsel %vm667, %v666, 0
      %695 = vmatprep.subr.mxu0 0.0
      %696 = vmatpush1.xpose.msra.mxu0 %v672
      %697 = vmatprep.subr.mxu0 0.0
      %698 = vmatpush1.xpose.msra.mxu0 %v675
      %699 = vmatprep.subr.mxu0 0.0
      %700 = vmatpush1.xpose.msra.mxu0 %v678
      %701 = vmatprep.subr.mxu0 0.0
      %702 = vmatpush1.xpose.msra.mxu0 %v681
      %703 = vmatprep.subr.mxu0 0.0
      %704 = vmatpush1.xpose.msra.mxu0 %v684
      %705 = vmatprep.subr.mxu0 0.0
      %706 = vmatpush1.xpose.msra.mxu0 %v687
      %707 = vmatprep.subr.mxu0 0.0
      %708 = vmatpush1.xpose.msra.mxu0 %v690
      %709 = vmatprep.subr.mxu0 0.0
      %710 = vmatpush1.xpose.msra.mxu0 %v693
      %711 = vmatprep.subr.mxu0 0.0
      %712 = vmatpush1.xpose.msra.mxu0 0.0
      %713 = vmatprep.subr.mxu0 0.0
      %714 = vmatpush1.xpose.msra.mxu0 0.0
      %715 = vmatprep.subr.mxu0 0.0
      %716 = vmatpush1.xpose.msra.mxu0 0.0
      %717 = vmatprep.subr.mxu0 0.0
      %718 = vmatpush1.xpose.msra.mxu0 0.0
      %719 = vmatprep.subr.mxu0 0.0
      %720 = vmatpush1.xpose.msra.mxu0 0.0
      %721 = vmatprep.subr.mxu0 0.0
      %722 = vmatpush1.xpose.msra.mxu0 0.0
      %723 = vmatprep.subr.mxu0 0.0
      %724 = vmatpush1.xpose.msra.mxu0 0.0
      %725 = vmatprep.subr.mxu0 0.0
      %726 = vmatpush1.xpose.msra.mxu0 0.0
      %727 = vmatprep.subr.mxu0 0.0
      %728 = vmatpush1.xpose.msra.mxu0 0.0
      %729 = vmatprep.subr.mxu0 0.0
      %730 = vmatpush1.xpose.msra.mxu0 0.0
      %731 = vmatprep.subr.mxu0 0.0
      %732 = vmatpush1.xpose.msra.mxu0 0.0
      %733 = vmatprep.subr.mxu0 0.0
      %734 = vmatpush1.xpose.msra.mxu0 0.0
      %735 = vmatprep.subr.mxu0 0.0
      %736 = vmatpush1.xpose.msra.mxu0 0.0
      %737 = vmatprep.subr.mxu0 0.0
      %738 = vmatpush1.xpose.msra.mxu0 0.0
      %739 = vmatprep.subr.mxu0 0.0
      %740 = vmatpush1.xpose.msra.mxu0 0.0
      %741 = vmatprep.subr.mxu0 0.0
      %742 = vmatpush1.xpose.msra.mxu0 0.0
      %743 = vmatprep.subr.mxu0 0.0
      %744 = vmatpush1.xpose.msra.mxu0 0.0
      %745 = vmatprep.subr.mxu0 0.0
      %746 = vmatpush1.xpose.msra.mxu0 0.0
      %747 = vmatprep.subr.mxu0 0.0
      %748 = vmatpush1.xpose.msra.mxu0 0.0
      %749 = vmatprep.subr.mxu0 0.0
      %750 = vmatpush1.xpose.msra.mxu0 0.0
      %751 = vmatprep.subr.mxu0 0.0
      %752 = vmatpush1.xpose.msra.mxu0 0.0
      %753 = vmatprep.subr.mxu0 0.0
      %754 = vmatpush1.xpose.msra.mxu0 0.0
      %755 = vmatprep.subr.mxu0 0.0
      %756 = vmatpush1.xpose.msra.mxu0 0.0
      %757 = vmatprep.subr.mxu0 0.0
      %758 = vmatpush1.xpose.msra.mxu0 0.0
      %759 = vmatprep.mubr.f32.mxu0 0.0
      %760 = vmatmul.mubr.f32.gmra.mrb[0].mxu0 %v669
      %v761 = vpop.f32.mrb[0].mxu0
      %v762 = vadd.f32 0.0, %v761
      %v763 = vpop.f32.mrb[0].mxu0
      %764 = vdwg.mxu0
      %v765 = vxor.u32 %v762, 2147483648
      %v766 = vmul.f32 %v765, 1.442695
      %v767 = vpow.pop %v766
      %v768 = vadd.f32 %v767, 1.0
      %v769 = vrcp.pop %v768
      %v770 = vmul.f32 1.0, %v769
      %v771 = vlaneseq
      %v772 = vshrl.u32 %v771, 7
      %v773 = vsub.s32 0, %v772
      %v774 = vrot.slane %v770, %v773
      %776 = vbcast.lane.b32.xlu0 %v774, 256
      %v777 = vpop.permute.xlu0 %776
      %s779 = sor.u32 256, 8
      %780 = vbcast.lane.b32.xlu0 %v774, %s779
      %v781 = vpop.permute.xlu0 %780
      %s783 = sor.u32 256, 16
      %784 = vbcast.lane.b32.xlu0 %v774, %s783
      %v785 = vpop.permute.xlu0 %784
      %s787 = sor.u32 256, 24
      %788 = vbcast.lane.b32.xlu0 %v774, %s787
      %v789 = vpop.permute.xlu0 %788
      %s791 = sor.u32 256, 32
      %792 = vbcast.lane.b32.xlu0 %v774, %s791
      %v793 = vpop.permute.xlu0 %792
      %s795 = sor.u32 256, 40
      %796 = vbcast.lane.b32.xlu0 %v774, %s795
      %v797 = vpop.permute.xlu0 %796
      %s799 = sor.u32 256, 48
      %800 = vbcast.lane.b32.xlu0 %v774, %s799
      %v801 = vpop.permute.xlu0 %800
      %s803 = sor.u32 256, 56
      %804 = vbcast.lane.b32.xlu0 %v774, %s803
      %v805 = vpop.permute.xlu0 %804
      %v806 = vlaneseq
      %v807 = vshrl.u32 %v806, 7
      %v808 = vsub.s32 1, %v807
      %v809 = vrot.slane %v770, %v808
      %811 = vbcast.lane.b32.xlu0 %v809, 256
      %v812 = vpop.permute.xlu0 %811
      %s814 = sor.u32 256, 8
      %815 = vbcast.lane.b32.xlu0 %v809, %s814
      %v816 = vpop.permute.xlu0 %815
      %s818 = sor.u32 256, 16
      %819 = vbcast.lane.b32.xlu0 %v809, %s818
      %v820 = vpop.permute.xlu0 %819
      %s822 = sor.u32 256, 24
      %823 = vbcast.lane.b32.xlu0 %v809, %s822
      %v824 = vpop.permute.xlu0 %823
      %s826 = sor.u32 256, 32
      %827 = vbcast.lane.b32.xlu0 %v809, %s826
      %v828 = vpop.permute.xlu0 %827
      %s830 = sor.u32 256, 40
      %831 = vbcast.lane.b32.xlu0 %v809, %s830
      %v832 = vpop.permute.xlu0 %831
      %s834 = sor.u32 256, 48
      %835 = vbcast.lane.b32.xlu0 %v809, %s834
      %v836 = vpop.permute.xlu0 %835
      %s838 = sor.u32 256, 56
      %839 = vbcast.lane.b32.xlu0 %v809, %s838
      %v840 = vpop.permute.xlu0 %839
      %v841 = vlaneseq
      %v842 = vshrl.u32 %v841, 7
      %v843 = vsub.s32 2, %v842
      %v844 = vrot.slane %v770, %v843
      %846 = vbcast.lane.b32.xlu0 %v844, 256
      %v847 = vpop.permute.xlu0 %846
      %s849 = sor.u32 256, 8
      %850 = vbcast.lane.b32.xlu0 %v844, %s849
      %v851 = vpop.permute.xlu0 %850
      %s853 = sor.u32 256, 16
      %854 = vbcast.lane.b32.xlu0 %v844, %s853
      %v855 = vpop.permute.xlu0 %854
      %s857 = sor.u32 256, 24
      %858 = vbcast.lane.b32.xlu0 %v844, %s857
      %v859 = vpop.permute.xlu0 %858
      %s861 = sor.u32 256, 32
      %862 = vbcast.lane.b32.xlu0 %v844, %s861
      %v863 = vpop.permute.xlu0 %862
      %s865 = sor.u32 256, 40
      %866 = vbcast.lane.b32.xlu0 %v844, %s865
      %v867 = vpop.permute.xlu0 %866
      %s869 = sor.u32 256, 48
      %870 = vbcast.lane.b32.xlu0 %v844, %s869
      %v871 = vpop.permute.xlu0 %870
      %s873 = sor.u32 256, 56
      %874 = vbcast.lane.b32.xlu0 %v844, %s873
      %v875 = vpop.permute.xlu0 %874
      %v876 = vlaneseq
      %v877 = vshrl.u32 %v876, 7
      %v878 = vsub.s32 3, %v877
      %v879 = vrot.slane %v770, %v878
      %881 = vbcast.lane.b32.xlu0 %v879, 256
      %v882 = vpop.permute.xlu0 %881
      %s884 = sor.u32 256, 8
      %885 = vbcast.lane.b32.xlu0 %v879, %s884
      %v886 = vpop.permute.xlu0 %885
      %s888 = sor.u32 256, 16
      %889 = vbcast.lane.b32.xlu0 %v879, %s888
      %v890 = vpop.permute.xlu0 %889
      %s892 = sor.u32 256, 24
      %893 = vbcast.lane.b32.xlu0 %v879, %s892
      %v894 = vpop.permute.xlu0 %893
      %s896 = sor.u32 256, 32
      %897 = vbcast.lane.b32.xlu0 %v879, %s896
      %v898 = vpop.permute.xlu0 %897
      %s900 = sor.u32 256, 40
      %901 = vbcast.lane.b32.xlu0 %v879, %s900
      %v902 = vpop.permute.xlu0 %901
      %s904 = sor.u32 256, 48
      %905 = vbcast.lane.b32.xlu0 %v879, %s904
      %v906 = vpop.permute.xlu0 %905
      %s908 = sor.u32 256, 56
      %909 = vbcast.lane.b32.xlu0 %v879, %s908
      %v910 = vpop.permute.xlu0 %909
      %v911 = vmul.f32 %v179, %v777
      %v912 = vmul.f32 %v180, %v777
      %v913 = vmul.f32 %v181, %v781
      %v914 = vmul.f32 %v182, %v781
      %v915 = vmul.f32 %v183, %v785
      %v916 = vmul.f32 %v184, %v785
      %v917 = vmul.f32 %v185, %v789
      %v918 = vmul.f32 %v186, %v789
      %v919 = vmul.f32 %v187, %v793
      %v920 = vmul.f32 %v188, %v793
      %v921 = vmul.f32 %v189, %v797
      %v922 = vmul.f32 %v190, %v797
      %v923 = vmul.f32 %v191, %v801
      %v924 = vmul.f32 %v192, %v801
      %v925 = vmul.f32 %v193, %v805
      %v926 = vmul.f32 %v194, %v805
      %v927 = vmul.f32 %v195, %v812
      %v928 = vmul.f32 %v196, %v812
      %v929 = vmul.f32 %v197, %v816
      %v930 = vmul.f32 %v198, %v816
      %v931 = vmul.f32 %v199, %v820
      %v932 = vmul.f32 %v200, %v820
      %v933 = vmul.f32 %v201, %v824
      %v934 = vmul.f32 %v202, %v824
      %v935 = vmul.f32 %v203, %v828
      %v936 = vmul.f32 %v204, %v828
      %v937 = vmul.f32 %v205, %v832
      %v938 = vmul.f32 %v206, %v832
      %v939 = vmul.f32 %v207, %v836
      %v940 = vmul.f32 %v208, %v836
      %v941 = vmul.f32 %v209, %v840
      %v942 = vmul.f32 %v210, %v840
      %v943 = vmul.f32 %v211, %v847
      %v944 = vmul.f32 %v212, %v847
      %v945 = vmul.f32 %v213, %v851
      %v946 = vmul.f32 %v214, %v851
      %v947 = vmul.f32 %v215, %v855
      %v948 = vmul.f32 %v216, %v855
      %v949 = vmul.f32 %v217, %v859
      %v950 = vmul.f32 %v218, %v859
      %v951 = vmul.f32 %v219, %v863
      %v952 = vmul.f32 %v220, %v863
      %v953 = vmul.f32 %v221, %v867
      %v954 = vmul.f32 %v222, %v867
      %v955 = vmul.f32 %v223, %v871
      %v956 = vmul.f32 %v224, %v871
      %v957 = vmul.f32 %v225, %v875
      %v958 = vmul.f32 %v226, %v875
      %v959 = vmul.f32 %v227, %v882
      %v960 = vmul.f32 %v228, %v882
      %v961 = vmul.f32 %v229, %v886
      %v962 = vmul.f32 %v230, %v886
      %v963 = vmul.f32 %v231, %v890
      %v964 = vmul.f32 %v232, %v890
      %v965 = vmul.f32 %v233, %v894
      %v966 = vmul.f32 %v234, %v894
      %v967 = vmul.f32 %v235, %v898
      %v968 = vmul.f32 %v236, %v898
      %v969 = vmul.f32 %v237, %v902
      %v970 = vmul.f32 %v238, %v902
      %v971 = vmul.f32 %v239, %v906
      %v972 = vmul.f32 %v240, %v906
      %v973 = vmul.f32 %v241, %v910
      %v974 = vmul.f32 %v242, %v910
      %975 = vst [vmem:[%s177] sm:$0xff] %v911
      %976 = vst [vmem:[%s177 + $0x8] sm:$0xff] %v912
      %977 = vst [vmem:[%s177 + $0x10] sm:$0xff] %v913
      %978 = vst [vmem:[%s177 + $0x18] sm:$0xff] %v914
      %979 = vst [vmem:[%s177 + $0x20] sm:$0xff] %v915
      %980 = vst [vmem:[%s177 + $0x28] sm:$0xff] %v916
      %981 = vst [vmem:[%s177 + $0x30] sm:$0xff] %v917
      %982 = vst [vmem:[%s177 + $0x38] sm:$0xff] %v918
      %983 = vst [vmem:[%s177 + $0x40] sm:$0xff] %v919
      %984 = vst [vmem:[%s177 + $0x48] sm:$0xff] %v920
      %985 = vst [vmem:[%s177 + $0x50] sm:$0xff] %v921
      %986 = vst [vmem:[%s177 + $0x58] sm:$0xff] %v922
      %987 = vst [vmem:[%s177 + $0x60] sm:$0xff] %v923
      %988 = vst [vmem:[%s177 + $0x68] sm:$0xff] %v924
      %989 = vst [vmem:[%s177 + $0x70] sm:$0xff] %v925
      %990 = vst [vmem:[%s177 + $0x78] sm:$0xff] %v926
      %991 = vst [vmem:[%s177 + $0x80] sm:$0xff] %v927
      %992 = vst [vmem:[%s177 + $0x88] sm:$0xff] %v928
      %993 = vst [vmem:[%s177 + $0x90] sm:$0xff] %v929
      %994 = vst [vmem:[%s177 + $0x98] sm:$0xff] %v930
      %995 = vst [vmem:[%s177 + $0xa0] sm:$0xff] %v931
      %996 = vst [vmem:[%s177 + $0xa8] sm:$0xff] %v932
      %997 = vst [vmem:[%s177 + $0xb0] sm:$0xff] %v933
      %998 = vst [vmem:[%s177 + $0xb8] sm:$0xff] %v934
      %999 = vst [vmem:[%s177 + $0xc0] sm:$0xff] %v935
      %1000 = vst [vmem:[%s177 + $0xc8] sm:$0xff] %v936
      %1001 = vst [vmem:[%s177 + $0xd0] sm:$0xff] %v937
      %1002 = vst [vmem:[%s177 + $0xd8] sm:$0xff] %v938
      %1003 = vst [vmem:[%s177 + $0xe0] sm:$0xff] %v939
      %1004 = vst [vmem:[%s177 + $0xe8] sm:$0xff] %v940
      %1005 = vst [vmem:[%s177 + $0xf0] sm:$0xff] %v941
      %1006 = vst [vmem:[%s177 + $0xf8] sm:$0xff] %v942
      %1007 = vst [vmem:[%s177 + $0x100] sm:$0xff] %v943
      %1008 = vst [vmem:[%s177 + $0x108] sm:$0xff] %v944
      %1009 = vst [vmem:[%s177 + $0x110] sm:$0xff] %v945
      %1010 = vst [vmem:[%s177 + $0x118] sm:$0xff] %v946
      %1011 = vst [vmem:[%s177 + $0x120] sm:$0xff] %v947
      %1012 = vst [vmem:[%s177 + $0x128] sm:$0xff] %v948
      %1013 = vst [vmem:[%s177 + $0x130] sm:$0xff] %v949
      %1014 = vst [vmem:[%s177 + $0x138] sm:$0xff] %v950
      %1015 = vst [vmem:[%s177 + $0x140] sm:$0xff] %v951
      %1016 = vst [vmem:[%s177 + $0x148] sm:$0xff] %v952
      %1017 = vst [vmem:[%s177 + $0x150] sm:$0xff] %v953
      %1018 = vst [vmem:[%s177 + $0x158] sm:$0xff] %v954
      %1019 = vst [vmem:[%s177 + $0x160] sm:$0xff] %v955
      %1020 = vst [vmem:[%s177 + $0x168] sm:$0xff] %v956
      %1021 = vst [vmem:[%s177 + $0x170] sm:$0xff] %v957
      %1022 = vst [vmem:[%s177 + $0x178] sm:$0xff] %v958
      %1023 = vst [vmem:[%s177 + $0x180] sm:$0xff] %v959
      %1024 = vst [vmem:[%s177 + $0x188] sm:$0xff] %v960
      %1025 = vst [vmem:[%s177 + $0x190] sm:$0xff] %v961
      %1026 = vst [vmem:[%s177 + $0x198] sm:$0xff] %v962
      %1027 = vst [vmem:[%s177 + $0x1a0] sm:$0xff] %v963
      %1028 = vst [vmem:[%s177 + $0x1a8] sm:$0xff] %v964
      %1029 = vst [vmem:[%s177 + $0x1b0] sm:$0xff] %v965
      %1030 = vst [vmem:[%s177 + $0x1b8] sm:$0xff] %v966
      %1031 = vst [vmem:[%s177 + $0x1c0] sm:$0xff] %v967
      %1032 = vst [vmem:[%s177 + $0x1c8] sm:$0xff] %v968
      %1033 = vst [vmem:[%s177 + $0x1d0] sm:$0xff] %v969
      %1034 = vst [vmem:[%s177 + $0x1d8] sm:$0xff] %v970
      %1035 = vst [vmem:[%s177 + $0x1e0] sm:$0xff] %v971
      %1036 = vst [vmem:[%s177 + $0x1e8] sm:$0xff] %v972
      %1037 = vst [vmem:[%s177 + $0x1f0] sm:$0xff] %v973
      %1038 = vst [vmem:[%s177 + $0x1f8] sm:$0xff] %v974
      %s1039 = smul.u32 4, %s14
      %p1040 = scmp.lt.s32.totalorder %s1039, 7
      %s1041 = scalar_select %p1040, %s1039, 7
      %s1042 = smul.addr %s1041, 16
      %s1043 = smul.addr %s1042, 8
      %s1044 = scalar_lea.vmem %s3, %s1043
      // Predicated region
      $region33: #{se_block_forward.1} parent=31 // pred_check
        %p1045 = pneg %p100
      $region34: #{se_block_forward.1} parent=31 // pred_check_branch
        %1047 = sbr.rel (%p1045) target = $region36
      $region35: #{se_block_forward.1} parent=31 // pred_region
        %s1048 = smul.u32 4, %s14
      $region36: #{se_block_forward.1} parent=31 // pred_fallthru
        _
    $region32: #{se_block_forward.1} parent=5 // pred_fallthru
      _
    %p1049 = scmp.le.s32.totalorder 2, %s9
    // Predicated region
    $region37: #{se_block_forward.1} parent=5 // pred_check
      %p1050 = pneg %p1049
    $region38: #{se_block_forward.1} parent=5 // pred_check_branch
      %1052 = sbr.rel (%p1050) target = $region40
    $region39: #{se_block_forward.1} parent=5 // pred_region
      %s1053 = ssub.s32 %s9, 2
      // Predicated region
      $region41: #{se_block_forward.1} parent=39 // pred_check
        %p1054 = pneg %p106
      $region42: #{se_block_forward.1} parent=39 // pred_check_branch
        %1056 = sbr.rel (%p1054) target = $region44
      $region43: #{se_block_forward.1} parent=39 // pred_region
        %s1057 = smul.u32 4, %s15
        %p1058 = scmp.lt.s32.totalorder %s1057, 7
        %s1059 = scalar_select %p1058, %s1057, 7
        %s1060 = smul.addr %s1059, 16
        %s1061 = smul.addr %s1060, 8
        %s1062 = scalar_lea.vmem %s3, %s1061
      $region44: #{se_block_forward.1} parent=39 // pred_fallthru
        _
    $region40: #{se_block_forward.1} parent=5 // pred_fallthru
      _
  $region6: #{se_block_forward.1} parent=0 // loop_footer
    %s13 = sadd.s32 1, %s9
  $region7: #{se_block_forward.1} parent=0 // loop_footer_branch
    %8 = sbr.rel target = $region3
  $region8: #{se_block_forward.1} parent=0 // loop_exit
    _

</llo_original>
